<compile_context>
chip_gen: v5e
topology: v5e:2x2
jax: 0.10.0
libtpu: 0.0.40
codegen_flags: <defaults>
</compile_context>

<pallas_src>
import functools

import jax
import jax.numpy as jnp
from jax.experimental import pallas as pl
from jax.experimental.pallas import tpu as pltpu

LANE = 128
_VMEM_LIMIT = 32 * 1024 * 1024  # tiles are tiny; 32 MiB is safe on v5e/v6e/v7x


def _round_up(x, m):
    return (x + m - 1) // m * m


def _pad2(a, rows, cols):
    return jnp.pad(a, ((0, rows - a.shape[0]), (0, cols - a.shape[1])))


# ---------------------------------------------------------------------------
# Pass 1: projection  h_ext = x @ W_ext  (bf16 MXU, f32 accumulate).
# The last two columns of W_ext are W @ a_dst^T and W @ a_src^T, so the per-node
# attention scores fall out of the same matmul; they are emitted separately in
# f32, while h is stored in bf16 for the aggregation pass.
# ---------------------------------------------------------------------------
def _proj_kernel(x_ref, w_ref, h_ref, s_ref):
    f_p = w_ref.shape[1]
    h = jnp.dot(
        x_ref[...].astype(jnp.bfloat16),
        w_ref[...],
        preferred_element_type=jnp.float32,
    )                                            # (tile, f_p) f32
    h_ref[...] = h.astype(jnp.bfloat16)          # bf16 activations (incl. score lanes)
    s_ref[...] = h[:, f_p - 2:f_p]               # f32 scores: col 0 = s_dst, 1 = s_src


def _project(x, w_ext, tile_n):
    n_pad, f_in = x.shape
    f_out = w_ext.shape[1]
    return pl.pallas_call(
        _proj_kernel,
        out_shape=(
            jax.ShapeDtypeStruct((n_pad, f_out), jnp.bfloat16),
            jax.ShapeDtypeStruct((n_pad, 2), jnp.float32),
        ),
        grid=(n_pad // tile_n,),
        in_specs=[
            pl.BlockSpec((tile_n, f_in), lambda i: (i, 0)),
            pl.BlockSpec((f_in, f_out), lambda i: (0, 0)),
        ],
        out_specs=(
            pl.BlockSpec((tile_n, f_out), lambda i: (i, 0)),
            pl.BlockSpec((tile_n, 2), lambda i: (i, 0)),
        ),
        compiler_params=pltpu.CompilerParams(
            dimension_semantics=("parallel",),
            vmem_limit_bytes=_VMEM_LIMIT,
        ),
    )(x, w_ext)


# ---------------------------------------------------------------------------
# Pass 2: flash-style masked softmax + aggregation.
#   grid = (dst tiles [parallel], src tiles [arbitrary/reduction])
#   e[i, j] = LeakyReLU(s_dst[i] + s_src[j], 0.2), masked by adj[i, j] != 0.
#   Running max / sum / unnormalized accumulator live in VMEM scratch; the
#   1/denom normalization is applied once, after the aggregation matmuls.
# ---------------------------------------------------------------------------
def _attn_kernel(apply_relu, sdst_ref, ssrc_ref, h_ref, adj_ref, b_ref,
                 o_ref, m_sc, l_sc, acc_sc):
    src = pl.program_id(1)

    @pl.when(src == 0)
    def _():
        m_sc[...] = jnp.full_like(m_sc, -jnp.inf)
        l_sc[...] = jnp.zeros_like(l_sc)
        acc_sc[...] = jnp.zeros_like(acc_sc)

    # Scores for this (dst tile, src tile) block.
    e = sdst_ref[...] + ssrc_ref[...]                       # (t_dst, t_src)
    e = jnp.where(e > 0, e, 0.2 * e)                        # LeakyReLU(0.2)
    e = jnp.where(adj_ref[...] != 0, e, jnp.float32(-1e30))  # int8 mask, no f32 cast

    # Online softmax update (masked entries underflow to exactly 0; self-loops
    # keep every real row's max finite).
    m_prev = m_sc[...]
    m_new = jnp.maximum(m_prev, jnp.max(e, axis=-1, keepdims=True))
    alpha = jnp.exp(m_prev - m_new)
    p = jnp.exp(e - m_new)
    l_sc[...] = alpha * l_sc[...] + jnp.sum(p, axis=-1, keepdims=True)
    acc_sc[...] = alpha * acc_sc[...] + jnp.dot(
        p.astype(jnp.bfloat16), h_ref[...], preferred_element_type=jnp.float32)
    m_sc[...] = m_new

    @pl.when(src == pl.num_programs(1) - 1)
    def _():
        # Normalize AFTER the aggregation matmul (one (tile, F) scale, EUP recip).
        out = acc_sc[...] * pl.reciprocal(l_sc[...], approx=True) + b_ref[...]
        if apply_relu:
            out = jnp.maximum(out, 0.0)
        o_ref[...] = out.astype(o_ref.dtype)


def _attention(s_dst, s_src, h, adj, b, tile_dst, tile_src, apply_relu, out_dtype):
    n_pad, f_out = h.shape
    kernel = functools.partial(_attn_kernel, apply_relu)
    return pl.pallas_call(
        kernel,
        out_shape=jax.ShapeDtypeStruct((n_pad, f_out), out_dtype),
        grid=(n_pad // tile_dst, n_pad // tile_src),
        in_specs=[
            pl.BlockSpec((tile_dst, 1), lambda i, j: (i, 0)),       # s_dst column
            pl.BlockSpec((1, tile_src), lambda i, j: (0, j)),       # s_src row
            pl.BlockSpec((tile_src, f_out), lambda i, j: (j, 0)),   # bf16 source feats
            pl.BlockSpec((tile_dst, tile_src), lambda i, j: (i, j)),  # int8 adj block
            pl.BlockSpec((1, f_out), lambda i, j: (0, 0)),          # bias
        ],
        out_specs=pl.BlockSpec((tile_dst, f_out), lambda i, j: (i, 0)),
        scratch_shapes=[
            pltpu.VMEM((tile_dst, 1), jnp.float32),      # running max
            pltpu.VMEM((tile_dst, 1), jnp.float32),      # running sum
            pltpu.VMEM((tile_dst, f_out), jnp.float32),  # unnormalized accumulator
        ],
        compiler_params=pltpu.CompilerParams(
            dimension_semantics=("parallel", "arbitrary"),
            vmem_limit_bytes=_VMEM_LIMIT,
        ),
    )(s_dst, s_src, h, adj, b)


# ---------------------------------------------------------------------------
# Model wrapper.
# ---------------------------------------------------------------------------
def _extend_weight(w, a_dst, a_src, rows_p, cols_p):
    """[W | 0 ... 0 | W@a_dst^T | W@a_src^T], zero-padded to (rows_p, cols_p), bf16."""
    f_in, f_out = w.shape
    w_ext = jnp.zeros((rows_p, cols_p), jnp.float32)
    w_ext = w_ext.at[:f_in, :f_out].set(w)
    w_ext = w_ext.at[:f_in, cols_p - 2].set((w @ a_dst.reshape(-1, 1))[:, 0])
    w_ext = w_ext.at[:f_in, cols_p - 1].set((w @ a_src.reshape(-1, 1))[:, 0])
    return w_ext.astype(jnp.bfloat16)


def node_classification_gat(x, adj, params, *, tile_n=128, tile_src=128):
    # tile sweep guidance: v5e keep 128/128; v6e try 256/256; v7x keep an even
    # number of dst tiles and stay within the 64 MiB VMEM budget (trivial here).
    n, in_c = x.shape
    hid_c = params["w1"].shape[1]
    out_c = params["w2"].shape[1]

    n_pad = _round_up(_round_up(max(n, tile_n, tile_src), tile_n), tile_src)
    assert n_pad % tile_n == 0 and n_pad % tile_src == 0
    in_p = _round_up(in_c, LANE)
    hid_p = _round_up(hid_c + 2, LANE)   # +2 spare lanes for the folded score columns
    out_p = _round_up(out_c + 2, LANE)

    x_p = _pad2(x, n_pad, in_p)
    adj_p = _pad2(adj, n_pad, n_pad).astype(jnp.int8)

    w1e = _extend_weight(params["w1"], params["a_dst1"], params["a_src1"], in_p, hid_p)
    b1 = _pad2(params["b1"], 1, hid_p)
    w2e = _extend_weight(params["w2"], params["a_dst2"], params["a_src2"], hid_p, out_p)
    b2 = _pad2(params["b2"], 1, out_p)

    # ---- Layer 1: GATConv(in, hid) + ReLU, bf16 activations out ----
    h1, sc1 = _project(x_p, w1e, tile_n)
    h1a = _attention(sc1[:, 0:1], sc1[:, 1:2].T, h1, adj_p, b1,
                     tile_n, tile_src, apply_relu=True, out_dtype=jnp.bfloat16)

    # ---- Layer 2: GATConv(hid, out), f32 logits ----
    # (Score/padding lanes of h1a are annihilated by the zero rows of w2e.)
    h2, sc2 = _project(h1a, w2e, tile_n)
    out = _attention(sc2[:, 0:1], sc2[:, 1:2].T, h2, adj_p, b2,
                     tile_n, tile_src, apply_relu=False, out_dtype=jnp.float32)
    return out[:n, :out_c]


def build_dense_adjacency(edge_index, num_nodes):
    """adj[i, j] = 1 iff edge j -> i exists; self-loops added (PyG add_self_loops)."""
    src, dst = edge_index[0], edge_index[1]
    adj = jnp.zeros((num_nodes, num_nodes), jnp.int8)
    adj = adj.at[dst, src].set(jnp.int8(1))
    diag = jnp.arange(num_nodes)
    adj = adj.at[diag, diag].set(jnp.int8(1))
    return adj


def init_params(key, in_channels, hidden_channels, out_channels):
    ks = jax.random.split(key, 8)
    s = 0.1
    return {
        # GATConv(in_channels, hidden_channels), heads=1
        "w1":     s * jax.random.normal(ks[0], (in_channels, hidden_channels), jnp.float32),
        "a_src1": s * jax.random.normal(ks[1], (1, hidden_channels), jnp.float32),
        "a_dst1": s * jax.random.normal(ks[2], (1, hidden_channels), jnp.float32),
        "b1":     s * jax.random.normal(ks[3], (1, hidden_channels), jnp.float32),
        # GATConv(hidden_channels, out_channels), heads=1
        "w2":     s * jax.random.normal(ks[4], (hidden_channels, out_channels), jnp.float32),
        "a_src2": s * jax.random.normal(ks[5], (1, out_channels), jnp.float32),
        "a_dst2": s * jax.random.normal(ks[6], (1, out_channels), jnp.float32),
        "b2":     s * jax.random.normal(ks[7], (1, out_channels), jnp.float32),
    }


if __name__ == "__main__":
    N_NODES = 300          # pads to 384 -> 3 dst tiles x 3 src tiles per attention pass
    IN_CH, HIDDEN_CH, OUT_CH = 16, 32, 8
    N_EDGES = 900

    key = jax.random.PRNGKey(0)
    k_x, k_e, k_p = jax.random.split(key, 3)

    x = jax.random.normal(k_x, (N_NODES, IN_CH), jnp.float32)
    edge_index = jax.random.randint(k_e, (2, N_EDGES), 0, N_NODES, jnp.int32)
    adj = build_dense_adjacency(edge_index, N_NODES)
    params = init_params(k_p, IN_CH, HIDDEN_CH, OUT_CH)

    out = node_classification_gat(x, adj, params)
    out = jax.block_until_ready(out)
    assert out.shape == (N_NODES, OUT_CH)
    assert bool(jnp.all(jnp.isfinite(out)))
    print("KERNEL_OK")
</pallas_src>

<mosaic_0001>
module attributes {stable_mosaic.version = 11 : i64} {
  func.func @_proj_kernel(%arg0: i32, %arg1: memref<128x128xf32, #tpu.memory_space<vmem>>, %arg2: memref<128x128xbf16, #tpu.memory_space<vmem>>, %arg3: memref<128x128xbf16, #tpu.memory_space<vmem>>, %arg4: memref<128x2xf32, #tpu.memory_space<vmem>>) attributes {dimension_semantics = [#tpu.dimension_semantics<parallel>], iteration_bounds = array<i64: 3>, scalar_prefetch = 0 : i64, scratch_operands = 0 : i64, tpu.core_type = #tpu.core_type<tc>, window_params = [{transform_indices = @transform_0, window_bounds = array<i64: 128, 128>}, {pipeline_mode = #tpu.pipeline_mode<synchronous>, transform_indices = @transform_1, window_bounds = array<i64: 128, 128>}, {transform_indices = @transform_2, window_bounds = array<i64: 128, 128>}, {transform_indices = @transform_3, window_bounds = array<i64: 128, 2>}]} {
    %c0 = arith.constant 0 : index
    %c0_0 = arith.constant 0 : index
    %0 = vector.load %arg1[%c0, %c0_0] : memref<128x128xf32, #tpu.memory_space<vmem>>, vector<128x128xf32>
    %1 = arith.truncf %0 : vector<128x128xf32> to vector<128x128xbf16>
    %c0_1 = arith.constant 0 : index
    %c0_2 = arith.constant 0 : index
    %2 = vector.load %arg2[%c0_1, %c0_2] : memref<128x128xbf16, #tpu.memory_space<vmem>>, vector<128x128xbf16>
    %cst = arith.constant dense<0.000000e+00> : vector<128x128xf32>
    %3 = tpu.matmul %1, %2, %cst {dimension_numbers = #tpu.dot_dimension_numbers<[1], [0], [0], [1], [0, 0, 1, 1], [], []>} : vector<128x128xbf16>, vector<128x128xbf16>, vector<128x128xf32> -> vector<128x128xf32>
    %4 = arith.truncf %3 : vector<128x128xf32> to vector<128x128xbf16>
    %c0_3 = arith.constant 0 : index
    %c0_4 = arith.constant 0 : index
    %5 = vector.load %arg3[%c0_3, %c0_4] : memref<128x128xbf16, #tpu.memory_space<vmem>>, vector<128x128xbf16>
    tpu.vector_store %arg3[%c0_3, %c0_4], %4 {strides = array<i32>} : memref<128x128xbf16, #tpu.memory_space<vmem>>, vector<128x128xbf16>,
    %6 = vector.extract_strided_slice %3 {offsets = [0, 126], sizes = [128, 2], strides = [1, 1]} : vector<128x128xf32> to vector<128x2xf32>
    %c0_5 = arith.constant 0 : index
    %c0_6 = arith.constant 0 : index
    %7 = vector.load %arg4[%c0_5, %c0_6] : memref<128x2xf32, #tpu.memory_space<vmem>>, vector<128x2xf32>
    tpu.vector_store %arg4[%c0_5, %c0_6], %6 {strides = array<i32>} : memref<128x2xf32, #tpu.memory_space<vmem>>, vector<128x2xf32>,
    return
  }
  func.func @transform_0(%arg0: i32) -> (i32, i32) {
    %c0_i32 = arith.constant 0 : i32
    %c0_i32_0 = arith.constant 0 : i32
    return %arg0, %c0_i32 : i32, i32
  }
  func.func @transform_1(%arg0: i32) -> (i32, i32) {
    %c0_i32 = arith.constant 0 : i32
    %c0_i32_0 = arith.constant 0 : i32
    %c0_i32_1 = arith.constant 0 : i32
    return %c0_i32, %c0_i32_0 : i32, i32
  }
  func.func @transform_2(%arg0: i32) -> (i32, i32) {
    %c0_i32 = arith.constant 0 : i32
    %c0_i32_0 = arith.constant 0 : i32
    return %arg0, %c0_i32 : i32, i32
  }
  func.func @transform_3(%arg0: i32) -> (i32, i32) {
    %c0_i32 = arith.constant 0 : i32
    %c0_i32_0 = arith.constant 0 : i32
    return %arg0, %c0_i32 : i32, i32
  }
}

</mosaic_0001>

<llo_original>
// kernel: tpu_custom_call.1
$region0: #{tpu_custom_call.1}
  #allocation0 [shape = 'u32[]', space=smem, size = 0x4, offset = 0x4, fixed_abs, tag = 'smem constant byte address 0x4 - core index']
  #allocation1 [shape = 'u32[72,128]{1,0:T(1,128)}', space=vmem, size = 0x9000, scoped, tag = 'internal scratch']
  %s0 = inlined_call_operand.hbm [shape: f32[384,128], index: 0, kind: input, shape index: {}]
  %s1 = inlined_call_operand.hbm [shape: bf16[128,128], index: 1, kind: input, shape index: {}]
  %s2 = inlined_call_operand.hbm [shape: bf16[384,128], index: 2, kind: output, shape index: {0}]
  %s3 = inlined_call_operand.vmem [shape: f32[384,2], index: 3, kind: output, shape index: {1}]
  %4 = xla_tuple %s2, %s3
  %s5 = sld [smem:[#allocation0]]
  $region57: #{tpu_custom_call.1} parent=0
    _
  %s7 = ssub.s32 1, %s5
  %s8 = scalar_select 0, %s7, %s5
  $region1: #{tpu_custom_call.1} parent=0
    #allocation2 [shape = 'u8[131072]{0}', space=vmem, size = 0x20000, scoped, tag = 'input window, operand 0']
    #allocation3 [shape = 's32[2]{0}', space=sflag, size = 0x8, scoped, tag = 'scoped memory for tpu_custom_call.1']
    #allocation4 [shape = 's32[2]{0}', space=sflag, size = 0x8, scoped, tag = 'scoped memory for tpu_custom_call.1']
    #allocation5 [shape = 'u8[32768]{0}', space=vmem, size = 0x8000, scoped, tag = 'input window, operand 1, single buffered']
    #allocation6 [shape = 's32[1]{0}', space=sflag, size = 0x4, scoped, tag = 'scoped memory for tpu_custom_call.1']
    #allocation7 [shape = 'u8[65536]{0}', space=vmem, size = 0x10000, scoped, tag = 'output window, operand 0']
    %9 = vsyncpa [#allocation3], 0
    %s10 = scalar_lea.sflag [#allocation3], 1
    %11 = vsyncpa %s10, 0
    %12 = vsyncpa [#allocation6], 0
    %13 = vsyncpa [#allocation4], 0
    %s14 = scalar_lea.sflag [#allocation4], 1
    %15 = vsyncpa %s14, 0
    loop: start=0, step=1, limit=5
    $region2: #{tpu_custom_call.1} parent=1 // loop_pre_header
      _
    $region3: #{tpu_custom_call.1} parent=1 // loop_header
      %s17 = sphi 0, %s21
      %p18 = scmp.ge.s32.totalorder %s17, 5
      %s27 = sphi 0, %s29
      %s30 = sphi 0, %s27
      %s31 = sphi 0, %s30
      %s47 = sphi 0, %s31
      %s51 = sphi 0, %s51
      %s53 = sphi 0, %s51
      %s54 = sphi 0, %s53
      %s68 = sphi 0, %s54
      %s74 = sphi 0, %s76
      %s77 = sphi 0, %s74
      %s78 = sphi 0, %s77
      %s94 = sphi 0, %s78
      %s100 = sphi 0, %s102
      %s103 = sphi 0, %s100
      %s104 = sphi 0, %s103
      %s120 = sphi 0, %s104
    $region4: #{tpu_custom_call.1} parent=1 // loop_header_branch
      %20 = sbr.rel (%p18) target = $region8
    $region5: #{tpu_custom_call.1} parent=1 // loop_body
      %s22 = ssub.s32 %s17, 1
      %s23 = ssub.s32 %s17, 2
      %s24 = sadd.s32 %s17, 1
      %s25 = ssub.s32 %s17, %s24
      %p26 = scmp.eq.s32.totalorder %s25, 0
      %s28 = sadd.s32 %s27, 1
      %s29 = scalar_select %p26, %s27, %s28
      %p32 = pneg %p26
      %p33 = scmp.eq.s32.totalorder %s17, 2
      %p34 = por %p32, %p33
      %p35 = scmp.ne.s32.totalorder %s27, %s30
      %p36 = scmp.eq.s32.totalorder %s17, 0
      %p37 = por %p35, %p36
      %p38 = scmp.ne.s32.totalorder %s27, %s30
      %p39 = scmp.eq.s32.totalorder %s22, 2
      %p40 = por %p38, %p39
      %p41 = scmp.ne.s32.totalorder %s30, %s31
      %p42 = scmp.eq.s32.totalorder %s22, 0
      %p43 = por %p41, %p42
      %p44 = scmp.ne.s32.totalorder %s30, %s31
      %p45 = scmp.eq.s32.totalorder %s23, 2
      %p46 = por %p44, %p45
      %p48 = scmp.ne.s32.totalorder %s31, %s47
      %p49 = scmp.eq.s32.totalorder %s23, 0
      %p50 = por %p48, %p49
      %s52 = sadd.s32 %s51, 1
      %p55 = scmp.eq.s32.totalorder %s17, 2
      %p56 = scmp.ne.s32.totalorder %s51, %s53
      %p57 = scmp.eq.s32.totalorder %s17, 0
      %p58 = por %p56, %p57
      %p59 = scmp.ne.s32.totalorder %s51, %s53
      %p60 = scmp.eq.s32.totalorder %s22, 2
      %p61 = por %p59, %p60
      %p62 = scmp.ne.s32.totalorder %s53, %s54
      %p63 = scmp.eq.s32.totalorder %s22, 0
      %p64 = por %p62, %p63
      %p65 = scmp.ne.s32.totalorder %s53, %s54
      %p66 = scmp.eq.s32.totalorder %s23, 2
      %p67 = por %p65, %p66
      %p69 = scmp.ne.s32.totalorder %s54, %s68
      %p70 = scmp.eq.s32.totalorder %s23, 0
      %p71 = por %p69, %p70
      %s72 = ssub.s32 %s17, %s24
      %p73 = scmp.eq.s32.totalorder %s72, 0
      %s75 = sadd.s32 %s74, 1
      %s76 = scalar_select %p73, %s74, %s75
      %p79 = pneg %p73
      %p80 = scmp.eq.s32.totalorder %s17, 2
      %p81 = por %p79, %p80
      %p82 = scmp.ne.s32.totalorder %s74, %s77
      %p83 = scmp.eq.s32.totalorder %s17, 0
      %p84 = por %p82, %p83
      %p85 = scmp.ne.s32.totalorder %s74, %s77
      %p86 = scmp.eq.s32.totalorder %s22, 2
      %p87 = por %p85, %p86
      %p88 = scmp.ne.s32.totalorder %s77, %s78
      %p89 = scmp.eq.s32.totalorder %s22, 0
      %p90 = por %p88, %p89
      %p91 = scmp.ne.s32.totalorder %s77, %s78
      %p92 = scmp.eq.s32.totalorder %s23, 2
      %p93 = por %p91, %p92
      %p95 = scmp.ne.s32.totalorder %s78, %s94
      %p96 = scmp.eq.s32.totalorder %s23, 0
      %p97 = por %p95, %p96
      %s98 = ssub.s32 %s17, %s24
      %p99 = scmp.eq.s32.totalorder %s98, 0
      %s101 = sadd.s32 %s100, 1
      %s102 = scalar_select %p99, %s100, %s101
      %p105 = pneg %p99
      %p106 = scmp.eq.s32.totalorder %s17, 2
      %p107 = por %p105, %p106
      %p108 = scmp.ne.s32.totalorder %s100, %s103
      %p109 = scmp.eq.s32.totalorder %s17, 0
      %p110 = por %p108, %p109
      %p111 = scmp.ne.s32.totalorder %s100, %s103
      %p112 = scmp.eq.s32.totalorder %s22, 2
      %p113 = por %p111, %p112
      %p114 = scmp.ne.s32.totalorder %s103, %s104
      %p115 = scmp.eq.s32.totalorder %s22, 0
      %p116 = por %p114, %p115
      %p117 = scmp.ne.s32.totalorder %s103, %s104
      %p118 = scmp.eq.s32.totalorder %s23, 2
      %p119 = por %p117, %p118
      %p121 = scmp.ne.s32.totalorder %s104, %s120
      %p122 = scmp.eq.s32.totalorder %s23, 0
      %p123 = por %p121, %p122
      %p124 = scmp.le.s32.totalorder 1, %s17
      %p125 = scmp.lt.s32.totalorder %s17, 4
      %p126 = pnand %p124, %p125
      %p127 = pneg %p126
      // Predicated region
      $region9: #{tpu_custom_call.1} parent=5 // pred_check
        _
      $region10: #{tpu_custom_call.1} parent=5 // pred_check_branch
        %129 = sbr.rel (%p126) target = $region12
      $region11: #{tpu_custom_call.1} parent=5 // pred_region
        %s130 = ssub.s32 %s17, 1
        // Predicated region
        $region13: #{tpu_custom_call.1} parent=11 // pred_check
          %p131 = pneg %p64
        $region14: #{tpu_custom_call.1} parent=11 // pred_check_branch
          %133 = sbr.rel (%p131) target = $region16
        $region15: #{tpu_custom_call.1} parent=11 // pred_region
          %135 = vsyncadd [#allocation6], 0
          %s136 = sshll.u32 %s1, 4
          %s137 = int_to_ptr.hbm [resolvable:$true] %s136
          %s138 = sshll.u32 [#allocation5], 4
          %s139 = int_to_ptr.vmem [resolvable:$true] %s138
          %144 = dma.hbm_to_vmem [thread:$0]  %s137, 1024, %s139, [#allocation6], 64, 64, 4
        $region16: #{tpu_custom_call.1} parent=11 // pred_fallthru
          _
      $region12: #{tpu_custom_call.1} parent=5 // pred_fallthru
        _
      %p145 = scmp.lt.s32.totalorder %s17, 3
      // Predicated region
      $region17: #{tpu_custom_call.1} parent=5 // pred_check
        %p146 = pneg %p145
      $region18: #{tpu_custom_call.1} parent=5 // pred_check_branch
        %148 = sbr.rel (%p146) target = $region20
      $region19: #{tpu_custom_call.1} parent=5 // pred_region
        // Predicated region
        $region21: #{tpu_custom_call.1} parent=19 // pred_check
          %p149 = pneg %p37
        $region22: #{tpu_custom_call.1} parent=19 // pred_check_branch
          %151 = sbr.rel (%p149) target = $region24
        $region23: #{tpu_custom_call.1} parent=19 // pred_region
          %s152 = sand.u32 %s27, 1
          %s153 = scalar_lea.sflag [#allocation3], %s152
          %s154 = sand.u32 %s27, 1
          %s155 = smul.addr %s154, 128
          %s156 = scalar_lea.vmem [#allocation2], %s155
          %s157 = smul.u32 16, %s17
          %159 = vsyncadd %s153, 0
          %s160 = smul.addr %s157, 8
          %s161 = scalar_lea.hbm %s0, %s160
          %s162 = sshll.u32 %s161, 4
          %s163 = int_to_ptr.hbm [resolvable:$true] %s162
          %s164 = sshll.u32 %s156, 4
          %s165 = int_to_ptr.vmem [resolvable:$true] %s164
          %170 = dma.hbm_to_vmem [thread:$0]  %s163, 2048, %s165, %s153, 128, 128, 8
        $region24: #{tpu_custom_call.1} parent=19 // pred_fallthru
          _
      $region20: #{tpu_custom_call.1} parent=5 // pred_fallthru
        _
      %p171 = scmp.le.s32.totalorder 1, %s17
      %p172 = scmp.lt.s32.totalorder %s17, 4
      %p173 = pnand %p171, %p172
      %p174 = pneg %p173
      // Predicated region
      $region25: #{tpu_custom_call.1} parent=5 // pred_check
        _
      $region26: #{tpu_custom_call.1} parent=5 // pred_check_branch
        %176 = sbr.rel (%p173) target = $region28
      $region27: #{tpu_custom_call.1} parent=5 // pred_region
        %s177 = ssub.s32 %s17, 1
        %s178 = sand.u32 %s30, 1
        %s179 = scalar_lea.sflag [#allocation3], %s178
        %s180 = sand.u32 %s30, 1
        %s181 = smul.addr %s180, 128
        %s182 = scalar_lea.vmem [#allocation2], %s181
        // Predicated region
        $region29: #{tpu_custom_call.1} parent=27 // pred_check
          %p183 = pneg %p43
        $region30: #{tpu_custom_call.1} parent=27 // pred_check_branch
          %185 = sbr.rel (%p183) target = $region32
        $region31: #{tpu_custom_call.1} parent=27 // pred_region
          %187 = dma.done %s179, 2048
        $region32: #{tpu_custom_call.1} parent=27 // pred_fallthru
          _
        // Predicated region
        $region33: #{tpu_custom_call.1} parent=27 // pred_check
          %p188 = pneg %p64
        $region34: #{tpu_custom_call.1} parent=27 // pred_check_branch
          %190 = sbr.rel (%p188) target = $region36
        $region35: #{tpu_custom_call.1} parent=27 // pred_region
          %192 = dma.done [#allocation6], 1024
        $region36: #{tpu_custom_call.1} parent=27 // pred_fallthru
          _
        %s193 = sand.u32 %s30, 1
        %s194 = scalar_lea.sflag [#allocation3], %s193
        %s195 = sand.u32 %s30, 1
        %s196 = smul.addr %s195, 128
        %s197 = scalar_lea.vmem [#allocation2], %s196
        %p198 = pneg %p43
        %p199 = pneg %p40
        %p200 = pneg %p64
        %p201 = pneg %p61
        %p202 = pneg %p90
        %p203 = pneg %p87
        %s204 = sand.u32 %s77, 1
        %s205 = scalar_lea.sflag [#allocation4], %s204
        %s206 = sand.u32 %s77, 1
        %s207 = smul.addr %s206, 64
        %s208 = scalar_lea.vmem [#allocation7], %s207
        %p209 = pneg %p116
        %p210 = pneg %p113
        %s211 = smul.u32 16, %s22
        %p212 = scmp.lt.s32.totalorder %s211, 47
        %s213 = scalar_select %p212, %s211, 47
        %s214 = smul.addr %s213, 8
        %s215 = scalar_lea.vmem %s3, %s214
        %s216 = smul.u32 16, %s22
        %s217 = smul.u32 16, %s22
        %s218 = smul.u32 16, %s22
        %p219 = scmp.lt.s32.totalorder %s218, 47
        %s220 = scalar_select %p219, %s218, 47
        %s221 = smul.addr %s220, 8
        %s222 = scalar_lea.vmem %s3, %s221
        %s223 = smul.u32 16, %s22
        %v224 = vld [vmem:[%s182] sm:$0xff]
        %v225 = vld [vmem:[%s182 + $0x8] sm:$0xff]
        %v226 = vld [vmem:[%s182 + $0x10] sm:$0xff]
        %v227 = vld [vmem:[%s182 + $0x18] sm:$0xff]
        %v228 = vld [vmem:[%s182 + $0x20] sm:$0xff]
        %v229 = vld [vmem:[%s182 + $0x28] sm:$0xff]
        %v230 = vld [vmem:[%s182 + $0x30] sm:$0xff]
        %v231 = vld [vmem:[%s182 + $0x38] sm:$0xff]
        %v232 = vld [vmem:[%s182 + $0x40] sm:$0xff]
        %v233 = vld [vmem:[%s182 + $0x48] sm:$0xff]
        %v234 = vld [vmem:[%s182 + $0x50] sm:$0xff]
        %v235 = vld [vmem:[%s182 + $0x58] sm:$0xff]
        %v236 = vld [vmem:[%s182 + $0x60] sm:$0xff]
        %v237 = vld [vmem:[%s182 + $0x68] sm:$0xff]
        %v238 = vld [vmem:[%s182 + $0x70] sm:$0xff]
        %v239 = vld [vmem:[%s182 + $0x78] sm:$0xff]
        %v240 = vpack.c.bf16 %v225, %v224
        %v241 = vpack.c.bf16 %v227, %v226
        %v242 = vpack.c.bf16 %v229, %v228
        %v243 = vpack.c.bf16 %v231, %v230
        %v244 = vpack.c.bf16 %v233, %v232
        %v245 = vpack.c.bf16 %v235, %v234
        %v246 = vpack.c.bf16 %v237, %v236
        %v247 = vpack.c.bf16 %v239, %v238
        %v248 = vld [vmem:[#allocation5] sm:$0xf]
        %v249 = vld [vmem:[#allocation5 + $0x4] sm:$0xf]
        %v250 = vld [vmem:[#allocation5 + $0x8] sm:$0xf]
        %v251 = vld [vmem:[#allocation5 + $0xc] sm:$0xf]
        %v252 = vld [vmem:[#allocation5 + $0x10] sm:$0xf]
        %v253 = vld [vmem:[#allocation5 + $0x14] sm:$0xf]
        %v254 = vld [vmem:[#allocation5 + $0x18] sm:$0xf]
        %v255 = vld [vmem:[#allocation5 + $0x1c] sm:$0xf]
        %v256 = vld [vmem:[#allocation5 + $0x20] sm:$0xf]
        %v257 = vld [vmem:[#allocation5 + $0x24] sm:$0xf]
        %v258 = vld [vmem:[#allocation5 + $0x28] sm:$0xf]
        %v259 = vld [vmem:[#allocation5 + $0x2c] sm:$0xf]
        %v260 = vld [vmem:[#allocation5 + $0x30] sm:$0xf]
        %v261 = vld [vmem:[#allocation5 + $0x34] sm:$0xf]
        %v262 = vld [vmem:[#allocation5 + $0x38] sm:$0xf]
        %v263 = vld [vmem:[#allocation5 + $0x3c] sm:$0xf]
        %v280 = vunpack.c.l.b16 %v248
        %v281 = vunpack.c.l.b16 %v249
        %v282 = vunpack.c.l.b16 %v250
        %v283 = vunpack.c.l.b16 %v251
        %v284 = vunpack.c.l.b16 %v252
        %v285 = vunpack.c.l.b16 %v253
        %v286 = vunpack.c.l.b16 %v254
        %v287 = vunpack.c.l.b16 %v255
        %v288 = vunpack.c.l.b16 %v256
        %v289 = vunpack.c.l.b16 %v257
        %v290 = vunpack.c.l.b16 %v258
        %v291 = vunpack.c.l.b16 %v259
        %v292 = vunpack.c.l.b16 %v260
        %v293 = vunpack.c.l.b16 %v261
        %v294 = vunpack.c.l.b16 %v262
        %v295 = vunpack.c.l.b16 %v263
        %v296 = vpack.c.b16 %v281, %v280
        %v297 = vpack.c.b16 %v283, %v282
        %v298 = vpack.c.b16 %v285, %v284
        %v299 = vpack.c.b16 %v287, %v286
        %v300 = vpack.c.b16 %v289, %v288
        %v301 = vpack.c.b16 %v291, %v290
        %v302 = vpack.c.b16 %v293, %v292
        %v303 = vpack.c.b16 %v295, %v294
        %312 = vmatpush.bf16.msra.mxu0 %v303
        %313 = vmatpush.bf16.msra.mxu0 %v302
        %314 = vmatpush.bf16.msra.mxu0 %v301
        %315 = vmatpush.bf16.msra.mxu0 %v300
        %316 = vmatpush.bf16.msra.mxu0 %v299
        %317 = vmatpush.bf16.msra.mxu0 %v298
        %318 = vmatpush.bf16.msra.mxu0 %v297
        %319 = vmatpush.bf16.msra.mxu0 %v296
        %320 = vmatmul.bf16.gmra.mxu0 %v240
        %v321 = vpop.f32.mrf.mxu0
        %v322 = vadd.f32 0.0, %v321
        %v323 = vpop.f32.mrf.mxu0
        %v324 = vadd.f32 0.0, %v323
        %325 = vmatmul.bf16.gmra.mxu0 %v241
        %v326 = vpop.f32.mrf.mxu0
        %v327 = vadd.f32 0.0, %v326
        %v328 = vpop.f32.mrf.mxu0
        %v329 = vadd.f32 0.0, %v328
        %330 = vmatmul.bf16.gmra.mxu0 %v242
        %v331 = vpop.f32.mrf.mxu0
        %v332 = vadd.f32 0.0, %v331
        %v333 = vpop.f32.mrf.mxu0
        %v334 = vadd.f32 0.0, %v333
        %335 = vmatmul.bf16.gmra.mxu0 %v243
        %v336 = vpop.f32.mrf.mxu0
        %v337 = vadd.f32 0.0, %v336
        %v338 = vpop.f32.mrf.mxu0
        %v339 = vadd.f32 0.0, %v338
        %340 = vmatmul.bf16.gmra.mxu0 %v244
        %v341 = vpop.f32.mrf.mxu0
        %v342 = vadd.f32 0.0, %v341
        %v343 = vpop.f32.mrf.mxu0
        %v344 = vadd.f32 0.0, %v343
        %345 = vmatmul.bf16.gmra.mxu0 %v245
        %v346 = vpop.f32.mrf.mxu0
        %v347 = vadd.f32 0.0, %v346
        %v348 = vpop.f32.mrf.mxu0
        %v349 = vadd.f32 0.0, %v348
        %350 = vmatmul.bf16.gmra.mxu0 %v246
        %v351 = vpop.f32.mrf.mxu0
        %v352 = vadd.f32 0.0, %v351
        %v353 = vpop.f32.mrf.mxu0
        %v354 = vadd.f32 0.0, %v353
        %355 = vmatmul.bf16.gmra.mxu0 %v247
        %v356 = vpop.f32.mrf.mxu0
        %v357 = vadd.f32 0.0, %v356
        %v358 = vpop.f32.mrf.mxu0
        %v359 = vadd.f32 0.0, %v358
        %360 = vdwg.mxu0
        %v361 = vpack.c.bf16 %v322, %v322
        %v362 = vpack.c.bf16 %v324, %v324
        %v363 = vpack.c.bf16 %v327, %v327
        %v364 = vpack.c.bf16 %v329, %v329
        %v365 = vpack.c.bf16 %v332, %v332
        %v366 = vpack.c.bf16 %v334, %v334
        %v367 = vpack.c.bf16 %v337, %v337
        %v368 = vpack.c.bf16 %v339, %v339
        %v369 = vpack.c.bf16 %v342, %v342
        %v370 = vpack.c.bf16 %v344, %v344
        %v371 = vpack.c.bf16 %v347, %v347
        %v372 = vpack.c.bf16 %v349, %v349
        %v373 = vpack.c.bf16 %v352, %v352
        %v374 = vpack.c.bf16 %v354, %v354
        %v375 = vpack.c.bf16 %v357, %v357
        %v376 = vpack.c.bf16 %v359, %v359
        %377 = vst [vmem:[%s208] sm:$0xf] %v361
        %378 = vst [vmem:[%s208 + $0x4] sm:$0xf] %v362
        %379 = vst [vmem:[%s208 + $0x8] sm:$0xf] %v363
        %380 = vst [vmem:[%s208 + $0xc] sm:$0xf] %v364
        %381 = vst [vmem:[%s208 + $0x10] sm:$0xf] %v365
        %382 = vst [vmem:[%s208 + $0x14] sm:$0xf] %v366
        %383 = vst [vmem:[%s208 + $0x18] sm:$0xf] %v367
        %384 = vst [vmem:[%s208 + $0x1c] sm:$0xf] %v368
        %385 = vst [vmem:[%s208 + $0x20] sm:$0xf] %v369
        %386 = vst [vmem:[%s208 + $0x24] sm:$0xf] %v370
        %387 = vst [vmem:[%s208 + $0x28] sm:$0xf] %v371
        %388 = vst [vmem:[%s208 + $0x2c] sm:$0xf] %v372
        %389 = vst [vmem:[%s208 + $0x30] sm:$0xf] %v373
        %390 = vst [vmem:[%s208 + $0x34] sm:$0xf] %v374
        %391 = vst [vmem:[%s208 + $0x38] sm:$0xf] %v375
        %392 = vst [vmem:[%s208 + $0x3c] sm:$0xf] %v376
        %409 = vrot.lane.b32.xlu0 %v322, 2
        %v410 = vpop.permute.xlu0 %409
        %411 = vrot.lane.b32.xlu0 %v324, 2
        %v412 = vpop.permute.xlu0 %411
        %413 = vrot.lane.b32.xlu0 %v327, 2
        %v414 = vpop.permute.xlu0 %413
        %415 = vrot.lane.b32.xlu0 %v329, 2
        %v416 = vpop.permute.xlu0 %415
        %417 = vrot.lane.b32.xlu0 %v332, 2
        %v418 = vpop.permute.xlu0 %417
        %419 = vrot.lane.b32.xlu0 %v334, 2
        %v420 = vpop.permute.xlu0 %419
        %421 = vrot.lane.b32.xlu0 %v337, 2
        %v422 = vpop.permute.xlu0 %421
        %423 = vrot.lane.b32.xlu0 %v339, 2
        %v424 = vpop.permute.xlu0 %423
        %425 = vrot.lane.b32.xlu0 %v342, 2
        %v426 = vpop.permute.xlu0 %425
        %427 = vrot.lane.b32.xlu0 %v344, 2
        %v428 = vpop.permute.xlu0 %427
        %429 = vrot.lane.b32.xlu0 %v347, 2
        %v430 = vpop.permute.xlu0 %429
        %431 = vrot.lane.b32.xlu0 %v349, 2
        %v432 = vpop.permute.xlu0 %431
        %433 = vrot.lane.b32.xlu0 %v352, 2
        %v434 = vpop.permute.xlu0 %433
        %435 = vrot.lane.b32.xlu0 %v354, 2
        %v436 = vpop.permute.xlu0 %435
        %437 = vrot.lane.b32.xlu0 %v357, 2
        %v438 = vpop.permute.xlu0 %437
        %439 = vrot.lane.b32.xlu0 %v359, 2
        %v440 = vpop.permute.xlu0 %439
        %vm457 = vcmask 15360
        %458 = vst.msk [vmem:[%s222] sm:$0xff] %vm457, %v410
        %459 = vst.msk [vmem:[%s222 + $0x8] sm:$0xff] %vm457, %v412
        %460 = vst.msk [vmem:[%s222 + $0x10] sm:$0xff] %vm457, %v414
        %461 = vst.msk [vmem:[%s222 + $0x18] sm:$0xff] %vm457, %v416
        %462 = vst.msk [vmem:[%s222 + $0x20] sm:$0xff] %vm457, %v418
        %463 = vst.msk [vmem:[%s222 + $0x28] sm:$0xff] %vm457, %v420
        %464 = vst.msk [vmem:[%s222 + $0x30] sm:$0xff] %vm457, %v422
        %465 = vst.msk [vmem:[%s222 + $0x38] sm:$0xff] %vm457, %v424
        %466 = vst.msk [vmem:[%s222 + $0x40] sm:$0xff] %vm457, %v426
        %467 = vst.msk [vmem:[%s222 + $0x48] sm:$0xff] %vm457, %v428
        %468 = vst.msk [vmem:[%s222 + $0x50] sm:$0xff] %vm457, %v430
        %469 = vst.msk [vmem:[%s222 + $0x58] sm:$0xff] %vm457, %v432
        %470 = vst.msk [vmem:[%s222 + $0x60] sm:$0xff] %vm457, %v434
        %471 = vst.msk [vmem:[%s222 + $0x68] sm:$0xff] %vm457, %v436
        %472 = vst.msk [vmem:[%s222 + $0x70] sm:$0xff] %vm457, %v438
        %473 = vst.msk [vmem:[%s222 + $0x78] sm:$0xff] %vm457, %v440
        %s474 = sand.u32 %s77, 1
        %s475 = scalar_lea.sflag [#allocation4], %s474
        %s476 = sand.u32 %s77, 1
        %s477 = smul.addr %s476, 64
        %s478 = scalar_lea.vmem [#allocation7], %s477
        %s479 = smul.u32 16, %s22
        %p480 = scmp.lt.s32.totalorder %s479, 47
        %s481 = scalar_select %p480, %s479, 47
        %s482 = smul.addr %s481, 8
        %s483 = scalar_lea.vmem %s3, %s482
        // Predicated region
        $region37: #{tpu_custom_call.1} parent=27 // pred_check
          %p484 = pneg %p87
        $region38: #{tpu_custom_call.1} parent=27 // pred_check_branch
          %486 = sbr.rel (%p484) target = $region40
        $region39: #{tpu_custom_call.1} parent=27 // pred_region
          %s487 = smul.u32 16, %s22
          %489 = vsyncadd %s475, 0
          %s490 = smul.addr %s487, 4
          %s491 = scalar_lea.hbm %s2, %s490
          %s492 = sshll.u32 %s478, 4
          %s493 = int_to_ptr.vmem [resolvable:$true] %s492
          %s494 = sshll.u32 %s491, 4
          %s495 = int_to_ptr.hbm [resolvable:$true] %s494
          %500 = dma.vmem_to_hbm [thread:$0]  %s493, 1024, %s495, %s475, 64, 64, 4
        $region40: #{tpu_custom_call.1} parent=27 // pred_fallthru
          _
        // Predicated region
        $region41: #{tpu_custom_call.1} parent=27 // pred_check
          %p501 = pneg %p113
        $region42: #{tpu_custom_call.1} parent=27 // pred_check_branch
          %503 = sbr.rel (%p501) target = $region44
        $region43: #{tpu_custom_call.1} parent=27 // pred_region
          %s504 = smul.u32 16, %s22
        $region44: #{tpu_custom_call.1} parent=27 // pred_fallthru
          _
      $region28: #{tpu_custom_call.1} parent=5 // pred_fallthru
        _
      %p505 = scmp.le.s32.totalorder 2, %s17
      // Predicated region
      $region45: #{tpu_custom_call.1} parent=5 // pred_check
        %p506 = pneg %p505
      $region46: #{tpu_custom_call.1} parent=5 // pred_check_branch
        %508 = sbr.rel (%p506) target = $region48
      $region47: #{tpu_custom_call.1} parent=5 // pred_region
        %s509 = ssub.s32 %s17, 2
        // Predicated region
        $region49: #{tpu_custom_call.1} parent=47 // pred_check
          %p510 = pneg %p93
        $region50: #{tpu_custom_call.1} parent=47 // pred_check_branch
          %512 = sbr.rel (%p510) target = $region52
        $region51: #{tpu_custom_call.1} parent=47 // pred_region
          %s513 = sand.u32 %s78, 1
          %s514 = scalar_lea.sflag [#allocation4], %s513
          %s515 = sand.u32 %s78, 1
          %s516 = smul.addr %s515, 64
          %s517 = scalar_lea.vmem [#allocation7], %s516
          %519 = dma.done %s514, 1024
        $region52: #{tpu_custom_call.1} parent=47 // pred_fallthru
          _
        // Predicated region
        $region53: #{tpu_custom_call.1} parent=47 // pred_check
          %p520 = pneg %p119
        $region54: #{tpu_custom_call.1} parent=47 // pred_check_branch
          %522 = sbr.rel (%p520) target = $region56
        $region55: #{tpu_custom_call.1} parent=47 // pred_region
          %s523 = smul.u32 16, %s23
          %p524 = scmp.lt.s32.totalorder %s523, 47
          %s525 = scalar_select %p524, %s523, 47
          %s526 = smul.addr %s525, 8
          %s527 = scalar_lea.vmem %s3, %s526
        $region56: #{tpu_custom_call.1} parent=47 // pred_fallthru
          _
      $region48: #{tpu_custom_call.1} parent=5 // pred_fallthru
        _
    $region6: #{tpu_custom_call.1} parent=1 // loop_footer
      %s21 = sadd.s32 1, %s17
    $region7: #{tpu_custom_call.1} parent=1 // loop_footer_branch
      %16 = sbr.rel target = $region3
    $region8: #{tpu_custom_call.1} parent=1 // loop_exit
      _
    %528 = vsyncpa [#allocation3], 1
    %s529 = scalar_lea.sflag [#allocation3], 1
    %530 = vsyncpa %s529, 1
    %531 = vsyncpa [#allocation6], 1
    %532 = vsyncpa [#allocation4], 1
    %s533 = scalar_lea.sflag [#allocation4], 1
    %534 = vsyncpa %s533, 1

</llo_original>
